<compile_context>
chip_gen: v6e
topology: v6e:2x2x1
jax: 0.10.0
libtpu: 0.0.40
codegen_flags: <defaults>
</compile_context>

<pallas_src>
import math

import jax
import jax.numpy as jnp
from jax.experimental import pallas as pl
from jax.experimental.pallas import tpu as pltpu

CH = 32        # weight_matrix is 32x32 and multiplies (B, ch, ch) edges -> ch == 32
TB_MAX = 256   # batch tile: 2 bufs x 5 tensors x 256 x 4 KiB = 10 MiB (< 16 MiB scoped VMEM on v5e)


def _edge_weighting_kernel(alpha_ref, w_ref, e1_ref, e2_ref, e3_ref,
                           o2_ref, o3_ref):
    alpha = alpha_ref[0]
    nw = w_ref[...].astype(jnp.float32)          # (C, C), already softmaxed

    e1 = e1_ref[...].astype(jnp.float32)         # (TB, C, C)
    e2 = e2_ref[...].astype(jnp.float32)         # (TB, C, C)
    e3 = e3_ref[...].astype(jnp.float32)         # (TB, C, C)

    weighted_e1 = e1 * nw[None, :, :]            # broadcast (C,C) weight over batch

    # bmm(weighted_e1, e2^T) per batch element == einsum 'bij,bkj->bik'
    # (contraction over the last axis of both operands; no explicit transpose).
    m2 = jnp.einsum('bij,bkj->bik', weighted_e1, e2,
                    preferred_element_type=jnp.float32)
    m3 = jnp.einsum('bij,bkj->bik', weighted_e1, e3,
                    preferred_element_type=jnp.float32)

    o2_ref[...] = (alpha * m2 + (1.0 - alpha) * e2).astype(o2_ref.dtype)
    o3_ref[...] = (alpha * m3 + (1.0 - alpha) * e3).astype(o3_ref.dtype)


def edge_weighting_forward(edges_1, edges_2, edges_3, weight_matrix, alpha,
                           ch=CH, tb_max=TB_MAX):
    e1 = edges_1.reshape(-1, ch, ch)
    e2 = edges_2.reshape(-1, ch, ch)
    e3 = edges_3.reshape(-1, ch, ch)
    B = e1.shape[0]

    # Hoisted out of the kernel: global softmax over the flattened weight
    # matrix, computed exactly once as a trivial XLA fusion.
    norm_w = jax.nn.softmax(weight_matrix.reshape(-1)).reshape(ch, ch)
    norm_w = norm_w.astype(jnp.float32)
    alpha_arr = jnp.reshape(alpha, (1,)).astype(jnp.float32)

    tb = min(tb_max, B)
    num_tiles = pl.cdiv(B, tb)
    Bp = num_tiles * tb

    if Bp != B:  # pad batch to a multiple of the batch tile; trimmed below
        pad = ((0, Bp - B), (0, 0), (0, 0))
        e1p, e2p, e3p = (jnp.pad(x, pad) for x in (e1, e2, e3))
    else:
        e1p, e2p, e3p = e1, e2, e3

    out_shape = (
        jax.ShapeDtypeStruct((Bp, ch, ch), e2.dtype),
        jax.ShapeDtypeStruct((Bp, ch, ch), e3.dtype),
    )

    fn = pl.pallas_call(
        _edge_weighting_kernel,
        out_shape=out_shape,
        grid=(num_tiles,),
        in_specs=[
            pl.BlockSpec(memory_space=pltpu.MemorySpace.SMEM),      # alpha
            pl.BlockSpec((ch, ch), lambda b: (0, 0)),               # softmaxed weight
            pl.BlockSpec((tb, ch, ch), lambda b: (b, 0, 0)),        # edges_1
            pl.BlockSpec((tb, ch, ch), lambda b: (b, 0, 0)),        # edges_2
            pl.BlockSpec((tb, ch, ch), lambda b: (b, 0, 0)),        # edges_3
        ],
        out_specs=(
            pl.BlockSpec((tb, ch, ch), lambda b: (b, 0, 0)),
            pl.BlockSpec((tb, ch, ch), lambda b: (b, 0, 0)),
        ),
        compiler_params=pltpu.CompilerParams(
            dimension_semantics=("parallel",)),
    )

    o2, o3 = fn(alpha_arr, norm_w, e1p, e2p, e3p)
    if Bp != B:
        o2 = o2[:B]
        o3 = o3[:B]

    # Match PyTorch return: (edges_1 view, flattened edges_2_w, flattened edges_3_w)
    # edges_1 is a pure pass-through, so it never enters the kernel.
    return e1, o2.reshape(-1), o3.reshape(-1)


def _reference(edges_1, edges_2, edges_3, weight_matrix, alpha, ch=CH):
    e1 = edges_1.reshape(-1, ch, ch)
    e2 = edges_2.reshape(-1, ch, ch)
    e3 = edges_3.reshape(-1, ch, ch)
    nw = jax.nn.softmax(weight_matrix.reshape(-1)).reshape(ch, ch)
    we1 = e1 * nw[None]
    m2 = jnp.einsum('bij,bkj->bik', we1, e2)
    m3 = jnp.einsum('bij,bkj->bik', we1, e3)
    o2 = alpha * m2 + (1.0 - alpha) * e2
    o3 = alpha * m3 + (1.0 - alpha) * e3
    return e1, o2.reshape(-1), o3.reshape(-1)


if __name__ == "__main__":
    key = jax.random.PRNGKey(0)
    k_w, k1, k2, k3 = jax.random.split(key, 4)

    B = 2
    # Deterministic kaiming_uniform_(a=0.2, fan_in, leaky_relu) equivalent init
    a = 0.2
    fan_in = CH
    gain = math.sqrt(2.0 / (1.0 + a * a))
    bound = gain * math.sqrt(3.0 / fan_in)
    weight_matrix = jax.random.uniform(
        k_w, (CH, CH), jnp.float32, minval=-bound, maxval=bound)
    alpha = jnp.float32(0.5)

    edges_1 = jax.random.normal(k1, (B, CH, CH), jnp.float32)
    edges_2 = jax.random.normal(k2, (B, CH, CH), jnp.float32)
    edges_3 = jax.random.normal(k3, (B, CH, CH), jnp.float32)

    out1, out2, out3 = edge_weighting_forward(
        edges_1, edges_2, edges_3, weight_matrix, alpha)
    jax.block_until_ready((out1, out2, out3))

    ref1, ref2, ref3 = _reference(edges_1, edges_2, edges_3, weight_matrix, alpha)
    assert out1.shape == (B, CH, CH)
    assert out2.shape == (B * CH * CH,)
    assert out3.shape == (B * CH * CH,)
    assert jnp.allclose(out1, ref1, atol=1e-5)
    assert jnp.allclose(out2, ref2, atol=1e-5)
    assert jnp.allclose(out3, ref3, atol=1e-5)

    print("KERNEL_OK")
</pallas_src>

<mosaic_0001>
module attributes {stable_mosaic.version = 11 : i64} {
  func.func @_edge_weighting_kernel(%arg0: i32, %arg1: memref<1xf32, #tpu.memory_space<smem>>, %arg2: memref<32x32xf32, #tpu.memory_space<vmem>>, %arg3: memref<2x32x32xf32, #tpu.memory_space<vmem>>, %arg4: memref<2x32x32xf32, #tpu.memory_space<vmem>>, %arg5: memref<2x32x32xf32, #tpu.memory_space<vmem>>, %arg6: memref<2x32x32xf32, #tpu.memory_space<vmem>>, %arg7: memref<2x32x32xf32, #tpu.memory_space<vmem>>) attributes {dimension_semantics = [#tpu.dimension_semantics<parallel>], iteration_bounds = array<i64: 1>, scalar_prefetch = 0 : i64, scratch_operands = 0 : i64, tpu.core_type = #tpu.core_type<tc>, window_params = [{transform_indices = @transform_0, window_bounds = array<i64: 1>}, {pipeline_mode = #tpu.pipeline_mode<synchronous>, transform_indices = @transform_1, window_bounds = array<i64: 32, 32>}, {transform_indices = @transform_2, window_bounds = array<i64: 2, 32, 32>}, {transform_indices = @transform_3, window_bounds = array<i64: 2, 32, 32>}, {transform_indices = @transform_4, window_bounds = array<i64: 2, 32, 32>}, {transform_indices = @transform_5, window_bounds = array<i64: 2, 32, 32>}, {transform_indices = @transform_6, window_bounds = array<i64: 2, 32, 32>}]} {
    %c0 = arith.constant 0 : index
    %0 = memref.load %arg1[%c0] : memref<1xf32, #tpu.memory_space<smem>>
    %c0_0 = arith.constant 0 : index
    %c0_1 = arith.constant 0 : index
    %1 = vector.load %arg2[%c0_0, %c0_1] : memref<32x32xf32, #tpu.memory_space<vmem>>, vector<32x32xf32>
    %c0_2 = arith.constant 0 : index
    %c0_3 = arith.constant 0 : index
    %c0_4 = arith.constant 0 : index
    %2 = vector.load %arg3[%c0_2, %c0_3, %c0_4] : memref<2x32x32xf32, #tpu.memory_space<vmem>>, vector<2x32x32xf32>
    %c0_5 = arith.constant 0 : index
    %c0_6 = arith.constant 0 : index
    %c0_7 = arith.constant 0 : index
    %3 = vector.load %arg4[%c0_5, %c0_6, %c0_7] : memref<2x32x32xf32, #tpu.memory_space<vmem>>, vector<2x32x32xf32>
    %c0_8 = arith.constant 0 : index
    %c0_9 = arith.constant 0 : index
    %c0_10 = arith.constant 0 : index
    %4 = vector.load %arg5[%c0_8, %c0_9, %c0_10] : memref<2x32x32xf32, #tpu.memory_space<vmem>>, vector<2x32x32xf32>
    %5 = vector.shape_cast %1 : vector<32x32xf32> to vector<1x32x32xf32>
    %6 = vector.broadcast %5 : vector<1x32x32xf32> to vector<2x32x32xf32>
    %7 = arith.mulf %2, %6 : vector<2x32x32xf32>
    "tpu.trace_start"() <{level = 10 : i32, message = "bij,bkj->bik"}> : () -> ()
    %cst = arith.constant dense<0.000000e+00> : vector<2x32x32xf32>
    %8 = tpu.matmul %7, %3, %cst {dimension_numbers = #tpu.dot_dimension_numbers<[2], [2], [1], [1], [0, 0, 0, 1, 1, 1], [0], [0]>} : vector<2x32x32xf32>, vector<2x32x32xf32>, vector<2x32x32xf32> -> vector<2x32x32xf32>
    %cst_11 = arith.constant dense<0.000000e+00> : vector<2x32x32xf32>
    %9 = tpu.matmul %7, %4, %cst_11 {dimension_numbers = #tpu.dot_dimension_numbers<[2], [2], [1], [1], [0, 0, 0, 1, 1, 1], [0], [0]>} : vector<2x32x32xf32>, vector<2x32x32xf32>, vector<2x32x32xf32> -> vector<2x32x32xf32>
    "tpu.trace_stop"() : () -> ()
    %10 = vector.broadcast %0 : f32 to vector<2x32x32xf32>
    %11 = arith.mulf %10, %8 : vector<2x32x32xf32>
    %cst_12 = arith.constant 1.000000e+00 : f32
    %12 = arith.subf %cst_12, %0 : f32
    %13 = vector.broadcast %12 : f32 to vector<2x32x32xf32>
    %14 = arith.mulf %13, %3 : vector<2x32x32xf32>
    %15 = arith.addf %11, %14 : vector<2x32x32xf32>
    %c0_13 = arith.constant 0 : index
    %c0_14 = arith.constant 0 : index
    %c0_15 = arith.constant 0 : index
    %16 = vector.load %arg6[%c0_13, %c0_14, %c0_15] : memref<2x32x32xf32, #tpu.memory_space<vmem>>, vector<2x32x32xf32>
    tpu.vector_store %arg6[%c0_13, %c0_14, %c0_15], %15 {strides = array<i32>} : memref<2x32x32xf32, #tpu.memory_space<vmem>>, vector<2x32x32xf32>,
    %17 = vector.broadcast %0 : f32 to vector<2x32x32xf32>
    %18 = arith.mulf %17, %9 : vector<2x32x32xf32>
    %cst_16 = arith.constant 1.000000e+00 : f32
    %19 = arith.subf %cst_16, %0 : f32
    %20 = vector.broadcast %19 : f32 to vector<2x32x32xf32>
    %21 = arith.mulf %20, %4 : vector<2x32x32xf32>
    %22 = arith.addf %18, %21 : vector<2x32x32xf32>
    %c0_17 = arith.constant 0 : index
    %c0_18 = arith.constant 0 : index
    %c0_19 = arith.constant 0 : index
    %23 = vector.load %arg7[%c0_17, %c0_18, %c0_19] : memref<2x32x32xf32, #tpu.memory_space<vmem>>, vector<2x32x32xf32>
    tpu.vector_store %arg7[%c0_17, %c0_18, %c0_19], %22 {strides = array<i32>} : memref<2x32x32xf32, #tpu.memory_space<vmem>>, vector<2x32x32xf32>,
    return
  }
  func.func @transform_0(%arg0: i32) -> i32 {
    %c0_i32 = arith.constant 0 : i32
    %c0_i32_0 = arith.constant 0 : i32
    return %c0_i32 : i32
  }
  func.func @transform_1(%arg0: i32) -> (i32, i32) {
    %c0_i32 = arith.constant 0 : i32
    %c0_i32_0 = arith.constant 0 : i32
    %c0_i32_1 = arith.constant 0 : i32
    return %c0_i32, %c0_i32_0 : i32, i32
  }
  func.func @transform_2(%arg0: i32) -> (i32, i32, i32) {
    %c0_i32 = arith.constant 0 : i32
    %c0_i32_0 = arith.constant 0 : i32
    %c0_i32_1 = arith.constant 0 : i32
    return %arg0, %c0_i32, %c0_i32_0 : i32, i32, i32
  }
  func.func @transform_3(%arg0: i32) -> (i32, i32, i32) {
    %c0_i32 = arith.constant 0 : i32
    %c0_i32_0 = arith.constant 0 : i32
    %c0_i32_1 = arith.constant 0 : i32
    return %arg0, %c0_i32, %c0_i32_0 : i32, i32, i32
  }
  func.func @transform_4(%arg0: i32) -> (i32, i32, i32) {
    %c0_i32 = arith.constant 0 : i32
    %c0_i32_0 = arith.constant 0 : i32
    %c0_i32_1 = arith.constant 0 : i32
    return %arg0, %c0_i32, %c0_i32_0 : i32, i32, i32
  }
  func.func @transform_5(%arg0: i32) -> (i32, i32, i32) {
    %c0_i32 = arith.constant 0 : i32
    %c0_i32_0 = arith.constant 0 : i32
    %c0_i32_1 = arith.constant 0 : i32
    return %arg0, %c0_i32, %c0_i32_0 : i32, i32, i32
  }
  func.func @transform_6(%arg0: i32) -> (i32, i32, i32) {
    %c0_i32 = arith.constant 0 : i32
    %c0_i32_0 = arith.constant 0 : i32
    %c0_i32_1 = arith.constant 0 : i32
    return %arg0, %c0_i32, %c0_i32_0 : i32, i32, i32
  }
}

</mosaic_0001>

<llo_original>
// kernel: tpu_custom_call.1
$region0: #{tpu_custom_call.1}
  #allocation0 [shape = 'u32[]', space=smem, size = 0x4, offset = 0x4, fixed_abs, tag = 'smem constant byte address 0x4 - core index']
  #allocation1 [shape = 'u32[144,128]{1,0:T(1,128)}', space=vmem, size = 0x12000, scoped, tag = 'internal scratch']
  #allocation2 [shape = 'f32[1]{0:T(128)S(6)}', space=smem, size = 0x200, scoped, tag = 'scoped memory for tpu_custom_call.1']
  %s0 = inlined_call_operand.<no memory space> [shape: f32[1], index: 0, kind: input, shape index: {}]
  %s1 = inlined_call_operand.hbm [shape: f32[32,32], index: 1, kind: input, shape index: {}]
  %s2 = inlined_call_operand.hbm [shape: f32[2,32,32], index: 2, kind: input, shape index: {}]
  %s3 = inlined_call_operand.hbm [shape: f32[2,32,32], index: 3, kind: input, shape index: {}]
  %s4 = inlined_call_operand.hbm [shape: f32[2,32,32], index: 4, kind: input, shape index: {}]
  %s5 = inlined_call_operand.hbm [shape: f32[2,32,32], index: 5, kind: output, shape index: {0}]
  %s6 = inlined_call_operand.hbm [shape: f32[2,32,32], index: 6, kind: output, shape index: {1}]
  %7 = xla_tuple %s5, %s6
  %s8 = sld [smem:[#allocation0]]
  $region54: #{tpu_custom_call.1} parent=0
    _
  %s10 = ssub.s32 1, %s8
  %s11 = scalar_select 0, %s10, %s8
  %12 = sst [smem:[#allocation2]] %s0
  $region1: #{tpu_custom_call.1} parent=0
    #allocation3 [shape = 'u8[16384]{0}', space=vmem, size = 0x4000, scoped, tag = 'input window, operand 1, single buffered']
    #allocation4 [shape = 's32[1]{0}', space=sflag, size = 0x4, scoped, tag = 'scoped memory for tpu_custom_call.1']
    #allocation5 [shape = 's32[1]{0}', space=sflag, size = 0x4, scoped, tag = 'scoped memory for tpu_custom_call.1']
    #allocation6 [shape = 'u8[32768]{0}', space=vmem, size = 0x8000, scoped, tag = 'input window, operand 2, single buffered']
    #allocation7 [shape = 's32[1]{0}', space=sflag, size = 0x4, scoped, tag = 'scoped memory for tpu_custom_call.1']
    #allocation8 [shape = 'u8[32768]{0}', space=vmem, size = 0x8000, scoped, tag = 'input window, operand 3, single buffered']
    #allocation9 [shape = 'u8[32768]{0}', space=vmem, size = 0x8000, scoped, tag = 'input window, operand 4, single buffered']
    #allocation10 [shape = 's32[1]{0}', space=sflag, size = 0x4, scoped, tag = 'scoped memory for tpu_custom_call.1']
    #allocation11 [shape = 'u8[32768]{0}', space=vmem, size = 0x8000, scoped, tag = 'output window, operand 0, single buffered']
    #allocation12 [shape = 'u8[32768]{0}', space=vmem, size = 0x8000, scoped, tag = 'output window, operand 1, single buffered']
    #allocation13 [shape = 's32[1]{0}', space=sflag, size = 0x4, scoped, tag = 'scoped memory for tpu_custom_call.1']
    %13 = vsyncpa [#allocation4], 0
    %14 = vsyncpa [#allocation7], 0
    %15 = vsyncpa [#allocation10], 0
    %16 = vsyncpa [#allocation5], 0
    %17 = vsyncpa [#allocation13], 0
    // Predicated region
    $region2: #{tpu_custom_call.1} parent=1 // pred_check
      _
    $region3: #{tpu_custom_call.1} parent=1 // pred_check_branch
      %19 = sbr.rel (0) target = $region5
    $region4: #{tpu_custom_call.1} parent=1 // pred_region
      _
    $region5: #{tpu_custom_call.1} parent=1 // pred_fallthru
      _
    // Predicated region
    $region6: #{tpu_custom_call.1} parent=1 // pred_check
      _
    $region7: #{tpu_custom_call.1} parent=1 // pred_check_branch
      %21 = sbr.rel (0) target = $region9
    $region8: #{tpu_custom_call.1} parent=1 // pred_region
      %s23 = ssub.s32 512, 512
      %24 = vsyncadd [#allocation4], %s23
      %s25 = sshll.u32 [#allocation3], 4
      %s26 = int_to_ptr.vmem [resolvable:$true] %s25
      %31 = dma.hbm_to_vmem [thread:$0]  %s1, 512, %s26, [#allocation4], 128, 128, 8
    $region9: #{tpu_custom_call.1} parent=1 // pred_fallthru
      _
    // Predicated region
    $region10: #{tpu_custom_call.1} parent=1 // pred_check
      _
    $region11: #{tpu_custom_call.1} parent=1 // pred_check_branch
      %33 = sbr.rel (0) target = $region13
    $region12: #{tpu_custom_call.1} parent=1 // pred_region
      %s35 = ssub.s32 1024, 1024
      %36 = vsyncadd [#allocation7], %s35
      %s37 = sshll.u32 [#allocation6], 4
      %s38 = int_to_ptr.vmem [resolvable:$true] %s37
      %43 = dma.hbm_to_vmem [thread:$0]  %s2, 1024, %s38, [#allocation7], 128, 128, 8
    $region13: #{tpu_custom_call.1} parent=1 // pred_fallthru
      _
    // Predicated region
    $region14: #{tpu_custom_call.1} parent=1 // pred_check
      _
    $region15: #{tpu_custom_call.1} parent=1 // pred_check_branch
      %45 = sbr.rel (0) target = $region17
    $region16: #{tpu_custom_call.1} parent=1 // pred_region
      %s47 = ssub.s32 1024, 1024
      %48 = vsyncadd [#allocation7], %s47
      %s49 = sshll.u32 [#allocation8], 4
      %s50 = int_to_ptr.vmem [resolvable:$true] %s49
      %55 = dma.hbm_to_vmem [thread:$0]  %s3, 1024, %s50, [#allocation7], 128, 128, 8
    $region17: #{tpu_custom_call.1} parent=1 // pred_fallthru
      _
    // Predicated region
    $region18: #{tpu_custom_call.1} parent=1 // pred_check
      _
    $region19: #{tpu_custom_call.1} parent=1 // pred_check_branch
      %57 = sbr.rel (0) target = $region21
    $region20: #{tpu_custom_call.1} parent=1 // pred_region
      %s59 = ssub.s32 1024, 1024
      %60 = vsyncadd [#allocation10], %s59
      %s61 = sshll.u32 [#allocation9], 4
      %s62 = int_to_ptr.vmem [resolvable:$true] %s61
      %67 = dma.hbm_to_vmem [thread:$0]  %s4, 1024, %s62, [#allocation10], 128, 128, 8
    $region21: #{tpu_custom_call.1} parent=1 // pred_fallthru
      _
    // Predicated region
    $region22: #{tpu_custom_call.1} parent=1 // pred_check
      _
    $region23: #{tpu_custom_call.1} parent=1 // pred_check_branch
      %69 = sbr.rel (0) target = $region25
    $region24: #{tpu_custom_call.1} parent=1 // pred_region
      %70 = dma.done [#allocation4], 512
    $region25: #{tpu_custom_call.1} parent=1 // pred_fallthru
      _
    // Predicated region
    $region26: #{tpu_custom_call.1} parent=1 // pred_check
      _
    $region27: #{tpu_custom_call.1} parent=1 // pred_check_branch
      %72 = sbr.rel (0) target = $region29
    $region28: #{tpu_custom_call.1} parent=1 // pred_region
      %73 = dma.done [#allocation7], 1024
    $region29: #{tpu_custom_call.1} parent=1 // pred_fallthru
      _
    // Predicated region
    $region30: #{tpu_custom_call.1} parent=1 // pred_check
      _
    $region31: #{tpu_custom_call.1} parent=1 // pred_check_branch
      %75 = sbr.rel (0) target = $region33
    $region32: #{tpu_custom_call.1} parent=1 // pred_region
      %76 = dma.done [#allocation7], 1024
    $region33: #{tpu_custom_call.1} parent=1 // pred_fallthru
      _
    // Predicated region
    $region34: #{tpu_custom_call.1} parent=1 // pred_check
      _
    $region35: #{tpu_custom_call.1} parent=1 // pred_check_branch
      %78 = sbr.rel (0) target = $region37
    $region36: #{tpu_custom_call.1} parent=1 // pred_region
      %79 = dma.done [#allocation10], 1024
    $region37: #{tpu_custom_call.1} parent=1 // pred_fallthru
      _
    %s80 = sld [smem:[#allocation2]]
    %v81 = vld [vmem:[#allocation3] sm:$0xff]
    %v82 = vld [vmem:[#allocation3 + $0x8] sm:$0xff]
    %v83 = vld [vmem:[#allocation3 + $0x10] sm:$0xff]
    %v84 = vld [vmem:[#allocation3 + $0x18] sm:$0xff]
    %v85 = vld [vmem:[#allocation6] sm:$0xff]
    %v86 = vld [vmem:[#allocation6 + $0x8] sm:$0xff]
    %v87 = vld [vmem:[#allocation6 + $0x10] sm:$0xff]
    %v88 = vld [vmem:[#allocation6 + $0x18] sm:$0xff]
    %v89 = vld [vmem:[#allocation6 + $0x20] sm:$0xff]
    %v90 = vld [vmem:[#allocation6 + $0x28] sm:$0xff]
    %v91 = vld [vmem:[#allocation6 + $0x30] sm:$0xff]
    %v92 = vld [vmem:[#allocation6 + $0x38] sm:$0xff]
    %v93 = vld [vmem:[#allocation8] sm:$0xff]
    %v94 = vld [vmem:[#allocation8 + $0x8] sm:$0xff]
    %v95 = vld [vmem:[#allocation8 + $0x10] sm:$0xff]
    %v96 = vld [vmem:[#allocation8 + $0x18] sm:$0xff]
    %v97 = vld [vmem:[#allocation8 + $0x20] sm:$0xff]
    %v98 = vld [vmem:[#allocation8 + $0x28] sm:$0xff]
    %v99 = vld [vmem:[#allocation8 + $0x30] sm:$0xff]
    %v100 = vld [vmem:[#allocation8 + $0x38] sm:$0xff]
    %v101 = vld [vmem:[#allocation9] sm:$0xff]
    %v102 = vld [vmem:[#allocation9 + $0x8] sm:$0xff]
    %v103 = vld [vmem:[#allocation9 + $0x10] sm:$0xff]
    %v104 = vld [vmem:[#allocation9 + $0x18] sm:$0xff]
    %v105 = vld [vmem:[#allocation9 + $0x20] sm:$0xff]
    %v106 = vld [vmem:[#allocation9 + $0x28] sm:$0xff]
    %v107 = vld [vmem:[#allocation9 + $0x30] sm:$0xff]
    %v108 = vld [vmem:[#allocation9 + $0x38] sm:$0xff]
    %v109 = vmul.f32 %v85, %v81
    %v110 = vmul.f32 %v86, %v82
    %v111 = vmul.f32 %v87, %v83
    %v112 = vmul.f32 %v88, %v84
    %v113 = vmul.f32 %v89, %v81
    %v114 = vmul.f32 %v90, %v82
    %v115 = vmul.f32 %v91, %v83
    %v116 = vmul.f32 %v92, %v84
    %vm117 = vcmask 261120
    %v119 = vsel %vm117, %v109, 0
    %v122 = vsel %vm117, %v110, 0
    %v125 = vsel %vm117, %v111, 0
    %v128 = vsel %vm117, %v112, 0
    %v131 = vsel %vm117, %v93, 0
    %v134 = vsel %vm117, %v94, 0
    %v137 = vsel %vm117, %v95, 0
    %v140 = vsel %vm117, %v96, 0
    %142 = vmatprep.subr.mxu0 0.0
    %143 = vmatpush1.xpose.msra.mxu0 0.0
    %144 = vmatprep.subr.mxu0 0.0
    %145 = vmatpush1.xpose.msra.mxu0 0.0
    %146 = vmatprep.subr.mxu0 0.0
    %147 = vmatpush1.xpose.msra.mxu0 0.0
    %148 = vmatprep.subr.mxu0 0.0
    %149 = vmatpush1.xpose.msra.mxu0 0.0
    %150 = vmatprep.subr.mxu0 0.0
    %151 = vmatpush1.xpose.msra.mxu0 0.0
    %152 = vmatprep.subr.mxu0 0.0
    %153 = vmatpush1.xpose.msra.mxu0 0.0
    %154 = vmatprep.subr.mxu0 0.0
    %155 = vmatpush1.xpose.msra.mxu0 0.0
    %156 = vmatprep.subr.mxu0 0.0
    %157 = vmatpush1.xpose.msra.mxu0 0.0
    %158 = vmatprep.subr.mxu0 0.0
    %159 = vmatpush1.xpose.msra.mxu0 0.0
    %160 = vmatprep.subr.mxu0 0.0
    %161 = vmatpush1.xpose.msra.mxu0 0.0
    %162 = vmatprep.subr.mxu0 0.0
    %163 = vmatpush1.xpose.msra.mxu0 0.0
    %164 = vmatprep.subr.mxu0 0.0
    %165 = vmatpush1.xpose.msra.mxu0 0.0
    %166 = vmatprep.subr.mxu0 0.0
    %167 = vmatpush1.xpose.msra.mxu0 %v140
    %168 = vmatprep.subr.mxu0 0.0
    %169 = vmatpush1.xpose.msra.mxu0 %v137
    %170 = vmatprep.subr.mxu0 0.0
    %171 = vmatpush1.xpose.msra.mxu0 %v134
    %172 = vmatprep.subr.mxu0 0.0
    %173 = vmatpush1.xpose.msra.mxu0 %v131
    %174 = vmatprep.subr.mxu0 0.0
    %175 = vmatpush2.xpose.msra.mxu0 0.0
    %176 = vmatprep.subr.mxu0 0.0
    %177 = vmatpush2.xpose.msra.mxu0 0.0
    %178 = vmatprep.subr.mxu0 0.0
    %179 = vmatpush2.xpose.msra.mxu0 0.0
    %180 = vmatprep.subr.mxu0 0.0
    %181 = vmatpush2.xpose.msra.mxu0 0.0
    %182 = vmatprep.subr.mxu0 0.0
    %183 = vmatpush2.xpose.msra.mxu0 0.0
    %184 = vmatprep.subr.mxu0 0.0
    %185 = vmatpush2.xpose.msra.mxu0 0.0
    %186 = vmatprep.subr.mxu0 0.0
    %187 = vmatpush2.xpose.msra.mxu0 0.0
    %188 = vmatprep.subr.mxu0 0.0
    %189 = vmatpush2.xpose.msra.mxu0 0.0
    %190 = vmatprep.subr.mxu0 0.0
    %191 = vmatpush2.xpose.msra.mxu0 0.0
    %192 = vmatprep.subr.mxu0 0.0
    %193 = vmatpush2.xpose.msra.mxu0 0.0
    %194 = vmatprep.subr.mxu0 0.0
    %195 = vmatpush2.xpose.msra.mxu0 0.0
    %196 = vmatprep.subr.mxu0 0.0
    %197 = vmatpush2.xpose.msra.mxu0 0.0
    %198 = vmatprep.subr.mxu0 0.0
    %199 = vmatpush2.xpose.msra.mxu0 0.0
    %200 = vmatprep.subr.mxu0 0.0
    %201 = vmatpush2.xpose.msra.mxu0 0.0
    %202 = vmatprep.subr.mxu0 0.0
    %203 = vmatpush2.xpose.msra.mxu0 0.0
    %204 = vmatprep.subr.mxu0 0.0
    %205 = vmatpush2.xpose.msra.mxu0 0.0
    %206 = vmatprep.mubr.f32.mxu0 0.0
    %207 = vmatmul.mubr.f32.gmra.mxu0 %v119
    %v208 = vpop.f32.mrf.mxu0
    %v209 = vadd.f32 0.0, %v208
    %v210 = vpop.f32.mrf.mxu0
    %211 = vmatprep.mubr.f32.mxu0 0.0
    %212 = vmatmul.mubr.f32.gmra.mxu0 %v122
    %v213 = vpop.f32.mrf.mxu0
    %v214 = vadd.f32 0.0, %v213
    %v215 = vpop.f32.mrf.mxu0
    %216 = vmatprep.mubr.f32.mxu0 0.0
    %217 = vmatmul.mubr.f32.gmra.mxu0 %v125
    %v218 = vpop.f32.mrf.mxu0
    %v219 = vadd.f32 0.0, %v218
    %v220 = vpop.f32.mrf.mxu0
    %221 = vmatprep.mubr.f32.mxu0 0.0
    %222 = vmatmul.mubr.f32.gmra.mxu0 %v128
    %v223 = vpop.f32.mrf.mxu0
    %v224 = vadd.f32 0.0, %v223
    %v225 = vpop.f32.mrf.mxu0
    %226 = vdwg.mxu0
    %v228 = vsel %vm117, %v113, 0
    %v231 = vsel %vm117, %v114, 0
    %v234 = vsel %vm117, %v115, 0
    %v237 = vsel %vm117, %v116, 0
    %v240 = vsel %vm117, %v97, 0
    %v243 = vsel %vm117, %v98, 0
    %v246 = vsel %vm117, %v99, 0
    %v249 = vsel %vm117, %v100, 0
    %251 = vmatprep.subr.mxu0 0.0
    %252 = vmatpush1.xpose.msra.mxu0 0.0
    %253 = vmatprep.subr.mxu0 0.0
    %254 = vmatpush1.xpose.msra.mxu0 0.0
    %255 = vmatprep.subr.mxu0 0.0
    %256 = vmatpush1.xpose.msra.mxu0 0.0
    %257 = vmatprep.subr.mxu0 0.0
    %258 = vmatpush1.xpose.msra.mxu0 0.0
    %259 = vmatprep.subr.mxu0 0.0
    %260 = vmatpush1.xpose.msra.mxu0 0.0
    %261 = vmatprep.subr.mxu0 0.0
    %262 = vmatpush1.xpose.msra.mxu0 0.0
    %263 = vmatprep.subr.mxu0 0.0
    %264 = vmatpush1.xpose.msra.mxu0 0.0
    %265 = vmatprep.subr.mxu0 0.0
    %266 = vmatpush1.xpose.msra.mxu0 0.0
    %267 = vmatprep.subr.mxu0 0.0
    %268 = vmatpush1.xpose.msra.mxu0 0.0
    %269 = vmatprep.subr.mxu0 0.0
    %270 = vmatpush1.xpose.msra.mxu0 0.0
    %271 = vmatprep.subr.mxu0 0.0
    %272 = vmatpush1.xpose.msra.mxu0 0.0
    %273 = vmatprep.subr.mxu0 0.0
    %274 = vmatpush1.xpose.msra.mxu0 0.0
    %275 = vmatprep.subr.mxu0 0.0
    %276 = vmatpush1.xpose.msra.mxu0 %v249
    %277 = vmatprep.subr.mxu0 0.0
    %278 = vmatpush1.xpose.msra.mxu0 %v246
    %279 = vmatprep.subr.mxu0 0.0
    %280 = vmatpush1.xpose.msra.mxu0 %v243
    %281 = vmatprep.subr.mxu0 0.0
    %282 = vmatpush1.xpose.msra.mxu0 %v240
    %283 = vmatprep.subr.mxu0 0.0
    %284 = vmatpush2.xpose.msra.mxu0 0.0
    %285 = vmatprep.subr.mxu0 0.0
    %286 = vmatpush2.xpose.msra.mxu0 0.0
    %287 = vmatprep.subr.mxu0 0.0
    %288 = vmatpush2.xpose.msra.mxu0 0.0
    %289 = vmatprep.subr.mxu0 0.0
    %290 = vmatpush2.xpose.msra.mxu0 0.0
    %291 = vmatprep.subr.mxu0 0.0
    %292 = vmatpush2.xpose.msra.mxu0 0.0
    %293 = vmatprep.subr.mxu0 0.0
    %294 = vmatpush2.xpose.msra.mxu0 0.0
    %295 = vmatprep.subr.mxu0 0.0
    %296 = vmatpush2.xpose.msra.mxu0 0.0
    %297 = vmatprep.subr.mxu0 0.0
    %298 = vmatpush2.xpose.msra.mxu0 0.0
    %299 = vmatprep.subr.mxu0 0.0
    %300 = vmatpush2.xpose.msra.mxu0 0.0
    %301 = vmatprep.subr.mxu0 0.0
    %302 = vmatpush2.xpose.msra.mxu0 0.0
    %303 = vmatprep.subr.mxu0 0.0
    %304 = vmatpush2.xpose.msra.mxu0 0.0
    %305 = vmatprep.subr.mxu0 0.0
    %306 = vmatpush2.xpose.msra.mxu0 0.0
    %307 = vmatprep.subr.mxu0 0.0
    %308 = vmatpush2.xpose.msra.mxu0 0.0
    %309 = vmatprep.subr.mxu0 0.0
    %310 = vmatpush2.xpose.msra.mxu0 0.0
    %311 = vmatprep.subr.mxu0 0.0
    %312 = vmatpush2.xpose.msra.mxu0 0.0
    %313 = vmatprep.subr.mxu0 0.0
    %314 = vmatpush2.xpose.msra.mxu0 0.0
    %315 = vmatprep.mubr.f32.mxu0 0.0
    %316 = vmatmul.mubr.f32.gmra.mxu0 %v228
    %v317 = vpop.f32.mrf.mxu0
    %v318 = vadd.f32 0.0, %v317
    %v319 = vpop.f32.mrf.mxu0
    %320 = vmatprep.mubr.f32.mxu0 0.0
    %321 = vmatmul.mubr.f32.gmra.mxu0 %v231
    %v322 = vpop.f32.mrf.mxu0
    %v323 = vadd.f32 0.0, %v322
    %v324 = vpop.f32.mrf.mxu0
    %325 = vmatprep.mubr.f32.mxu0 0.0
    %326 = vmatmul.mubr.f32.gmra.mxu0 %v234
    %v327 = vpop.f32.mrf.mxu0
    %v328 = vadd.f32 0.0, %v327
    %v329 = vpop.f32.mrf.mxu0
    %330 = vmatprep.mubr.f32.mxu0 0.0
    %331 = vmatmul.mubr.f32.gmra.mxu0 %v237
    %v332 = vpop.f32.mrf.mxu0
    %v333 = vadd.f32 0.0, %v332
    %v334 = vpop.f32.mrf.mxu0
    %335 = vdwg.mxu0
    %v337 = vsel %vm117, %v101, 0
    %v340 = vsel %vm117, %v102, 0
    %v343 = vsel %vm117, %v103, 0
    %v346 = vsel %vm117, %v104, 0
    %348 = vmatprep.subr.mxu0 0.0
    %349 = vmatpush1.xpose.msra.mxu0 0.0
    %350 = vmatprep.subr.mxu0 0.0
    %351 = vmatpush1.xpose.msra.mxu0 0.0
    %352 = vmatprep.subr.mxu0 0.0
    %353 = vmatpush1.xpose.msra.mxu0 0.0
    %354 = vmatprep.subr.mxu0 0.0
    %355 = vmatpush1.xpose.msra.mxu0 0.0
    %356 = vmatprep.subr.mxu0 0.0
    %357 = vmatpush1.xpose.msra.mxu0 0.0
    %358 = vmatprep.subr.mxu0 0.0
    %359 = vmatpush1.xpose.msra.mxu0 0.0
    %360 = vmatprep.subr.mxu0 0.0
    %361 = vmatpush1.xpose.msra.mxu0 0.0
    %362 = vmatprep.subr.mxu0 0.0
    %363 = vmatpush1.xpose.msra.mxu0 0.0
    %364 = vmatprep.subr.mxu0 0.0
    %365 = vmatpush1.xpose.msra.mxu0 0.0
    %366 = vmatprep.subr.mxu0 0.0
    %367 = vmatpush1.xpose.msra.mxu0 0.0
    %368 = vmatprep.subr.mxu0 0.0
    %369 = vmatpush1.xpose.msra.mxu0 0.0
    %370 = vmatprep.subr.mxu0 0.0
    %371 = vmatpush1.xpose.msra.mxu0 0.0
    %372 = vmatprep.subr.mxu0 0.0
    %373 = vmatpush1.xpose.msra.mxu0 %v346
    %374 = vmatprep.subr.mxu0 0.0
    %375 = vmatpush1.xpose.msra.mxu0 %v343
    %376 = vmatprep.subr.mxu0 0.0
    %377 = vmatpush1.xpose.msra.mxu0 %v340
    %378 = vmatprep.subr.mxu0 0.0
    %379 = vmatpush1.xpose.msra.mxu0 %v337
    %380 = vmatprep.subr.mxu0 0.0
    %381 = vmatpush2.xpose.msra.mxu0 0.0
    %382 = vmatprep.subr.mxu0 0.0
    %383 = vmatpush2.xpose.msra.mxu0 0.0
    %384 = vmatprep.subr.mxu0 0.0
    %385 = vmatpush2.xpose.msra.mxu0 0.0
    %386 = vmatprep.subr.mxu0 0.0
    %387 = vmatpush2.xpose.msra.mxu0 0.0
    %388 = vmatprep.subr.mxu0 0.0
    %389 = vmatpush2.xpose.msra.mxu0 0.0
    %390 = vmatprep.subr.mxu0 0.0
    %391 = vmatpush2.xpose.msra.mxu0 0.0
    %392 = vmatprep.subr.mxu0 0.0
    %393 = vmatpush2.xpose.msra.mxu0 0.0
    %394 = vmatprep.subr.mxu0 0.0
    %395 = vmatpush2.xpose.msra.mxu0 0.0
    %396 = vmatprep.subr.mxu0 0.0
    %397 = vmatpush2.xpose.msra.mxu0 0.0
    %398 = vmatprep.subr.mxu0 0.0
    %399 = vmatpush2.xpose.msra.mxu0 0.0
    %400 = vmatprep.subr.mxu0 0.0
    %401 = vmatpush2.xpose.msra.mxu0 0.0
    %402 = vmatprep.subr.mxu0 0.0
    %403 = vmatpush2.xpose.msra.mxu0 0.0
    %404 = vmatprep.subr.mxu0 0.0
    %405 = vmatpush2.xpose.msra.mxu0 0.0
    %406 = vmatprep.subr.mxu0 0.0
    %407 = vmatpush2.xpose.msra.mxu0 0.0
    %408 = vmatprep.subr.mxu0 0.0
    %409 = vmatpush2.xpose.msra.mxu0 0.0
    %410 = vmatprep.subr.mxu0 0.0
    %411 = vmatpush2.xpose.msra.mxu0 0.0
    %412 = vmatprep.mubr.f32.mxu0 0.0
    %413 = vmatmul.mubr.f32.gmra.mxu0 %v119
    %v414 = vpop.f32.mrf.mxu0
    %v415 = vadd.f32 0.0, %v414
    %v416 = vpop.f32.mrf.mxu0
    %417 = vmatprep.mubr.f32.mxu0 0.0
    %418 = vmatmul.mubr.f32.gmra.mxu0 %v122
    %v419 = vpop.f32.mrf.mxu0
    %v420 = vadd.f32 0.0, %v419
    %v421 = vpop.f32.mrf.mxu0
    %422 = vmatprep.mubr.f32.mxu0 0.0
    %423 = vmatmul.mubr.f32.gmra.mxu0 %v125
    %v424 = vpop.f32.mrf.mxu0
    %v425 = vadd.f32 0.0, %v424
    %v426 = vpop.f32.mrf.mxu0
    %427 = vmatprep.mubr.f32.mxu0 0.0
    %428 = vmatmul.mubr.f32.gmra.mxu0 %v128
    %v429 = vpop.f32.mrf.mxu0
    %v430 = vadd.f32 0.0, %v429
    %v431 = vpop.f32.mrf.mxu0
    %432 = vdwg.mxu0
    %v434 = vsel %vm117, %v105, 0
    %v437 = vsel %vm117, %v106, 0
    %v440 = vsel %vm117, %v107, 0
    %v443 = vsel %vm117, %v108, 0
    %445 = vmatprep.subr.mxu0 0.0
    %446 = vmatpush1.xpose.msra.mxu0 0.0
    %447 = vmatprep.subr.mxu0 0.0
    %448 = vmatpush1.xpose.msra.mxu0 0.0
    %449 = vmatprep.subr.mxu0 0.0
    %450 = vmatpush1.xpose.msra.mxu0 0.0
    %451 = vmatprep.subr.mxu0 0.0
    %452 = vmatpush1.xpose.msra.mxu0 0.0
    %453 = vmatprep.subr.mxu0 0.0
    %454 = vmatpush1.xpose.msra.mxu0 0.0
    %455 = vmatprep.subr.mxu0 0.0
    %456 = vmatpush1.xpose.msra.mxu0 0.0
    %457 = vmatprep.subr.mxu0 0.0
    %458 = vmatpush1.xpose.msra.mxu0 0.0
    %459 = vmatprep.subr.mxu0 0.0
    %460 = vmatpush1.xpose.msra.mxu0 0.0
    %461 = vmatprep.subr.mxu0 0.0
    %462 = vmatpush1.xpose.msra.mxu0 0.0
    %463 = vmatprep.subr.mxu0 0.0
    %464 = vmatpush1.xpose.msra.mxu0 0.0
    %465 = vmatprep.subr.mxu0 0.0
    %466 = vmatpush1.xpose.msra.mxu0 0.0
    %467 = vmatprep.subr.mxu0 0.0
    %468 = vmatpush1.xpose.msra.mxu0 0.0
    %469 = vmatprep.subr.mxu0 0.0
    %470 = vmatpush1.xpose.msra.mxu0 %v443
    %471 = vmatprep.subr.mxu0 0.0
    %472 = vmatpush1.xpose.msra.mxu0 %v440
    %473 = vmatprep.subr.mxu0 0.0
    %474 = vmatpush1.xpose.msra.mxu0 %v437
    %475 = vmatprep.subr.mxu0 0.0
    %476 = vmatpush1.xpose.msra.mxu0 %v434
    %477 = vmatprep.subr.mxu0 0.0
    %478 = vmatpush2.xpose.msra.mxu0 0.0
    %479 = vmatprep.subr.mxu0 0.0
    %480 = vmatpush2.xpose.msra.mxu0 0.0
    %481 = vmatprep.subr.mxu0 0.0
    %482 = vmatpush2.xpose.msra.mxu0 0.0
    %483 = vmatprep.subr.mxu0 0.0
    %484 = vmatpush2.xpose.msra.mxu0 0.0
    %485 = vmatprep.subr.mxu0 0.0
    %486 = vmatpush2.xpose.msra.mxu0 0.0
    %487 = vmatprep.subr.mxu0 0.0
    %488 = vmatpush2.xpose.msra.mxu0 0.0
    %489 = vmatprep.subr.mxu0 0.0
    %490 = vmatpush2.xpose.msra.mxu0 0.0
    %491 = vmatprep.subr.mxu0 0.0
    %492 = vmatpush2.xpose.msra.mxu0 0.0
    %493 = vmatprep.subr.mxu0 0.0
    %494 = vmatpush2.xpose.msra.mxu0 0.0
    %495 = vmatprep.subr.mxu0 0.0
    %496 = vmatpush2.xpose.msra.mxu0 0.0
    %497 = vmatprep.subr.mxu0 0.0
    %498 = vmatpush2.xpose.msra.mxu0 0.0
    %499 = vmatprep.subr.mxu0 0.0
    %500 = vmatpush2.xpose.msra.mxu0 0.0
    %501 = vmatprep.subr.mxu0 0.0
    %502 = vmatpush2.xpose.msra.mxu0 0.0
    %503 = vmatprep.subr.mxu0 0.0
    %504 = vmatpush2.xpose.msra.mxu0 0.0
    %505 = vmatprep.subr.mxu0 0.0
    %506 = vmatpush2.xpose.msra.mxu0 0.0
    %507 = vmatprep.subr.mxu0 0.0
    %508 = vmatpush2.xpose.msra.mxu0 0.0
    %509 = vmatprep.mubr.f32.mxu0 0.0
    %510 = vmatmul.mubr.f32.gmra.mxu0 %v228
    %v511 = vpop.f32.mrf.mxu0
    %v512 = vadd.f32 0.0, %v511
    %v513 = vpop.f32.mrf.mxu0
    %514 = vmatprep.mubr.f32.mxu0 0.0
    %515 = vmatmul.mubr.f32.gmra.mxu0 %v231
    %v516 = vpop.f32.mrf.mxu0
    %v517 = vadd.f32 0.0, %v516
    %v518 = vpop.f32.mrf.mxu0
    %519 = vmatprep.mubr.f32.mxu0 0.0
    %520 = vmatmul.mubr.f32.gmra.mxu0 %v234
    %v521 = vpop.f32.mrf.mxu0
    %v522 = vadd.f32 0.0, %v521
    %v523 = vpop.f32.mrf.mxu0
    %524 = vmatprep.mubr.f32.mxu0 0.0
    %525 = vmatmul.mubr.f32.gmra.mxu0 %v237
    %v526 = vpop.f32.mrf.mxu0
    %v527 = vadd.f32 0.0, %v526
    %v528 = vpop.f32.mrf.mxu0
    %529 = vdwg.mxu0
    %v530 = vstv %s80
    %v531 = vmul.f32 %v530, %v209
    %v532 = vmul.f32 %v530, %v214
    %v533 = vmul.f32 %v530, %v219
    %v534 = vmul.f32 %v530, %v224
    %v535 = vmul.f32 %v530, %v318
    %v536 = vmul.f32 %v530, %v323
    %v537 = vmul.f32 %v530, %v328
    %v538 = vmul.f32 %v530, %v333
    %s539 = ssub.f32 1.0, %s80
    %v540 = vstv %s539
    %v541 = vmul.f32 %v540, %v93
    %v542 = vmul.f32 %v540, %v94
    %v543 = vmul.f32 %v540, %v95
    %v544 = vmul.f32 %v540, %v96
    %v545 = vmul.f32 %v540, %v97
    %v546 = vmul.f32 %v540, %v98
    %v547 = vmul.f32 %v540, %v99
    %v548 = vmul.f32 %v540, %v100
    %v549 = vadd.f32 %v531, %v541
    %v550 = vadd.f32 %v532, %v542
    %v551 = vadd.f32 %v533, %v543
    %v552 = vadd.f32 %v534, %v544
    %v553 = vadd.f32 %v535, %v545
    %v554 = vadd.f32 %v536, %v546
    %v555 = vadd.f32 %v537, %v547
    %v556 = vadd.f32 %v538, %v548
    %557 = vst.msk [vmem:[#allocation11] sm:$0xff] %vm117, %v549
    %558 = vst.msk [vmem:[#allocation11 + $0x8] sm:$0xff] %vm117, %v550
    %559 = vst.msk [vmem:[#allocation11 + $0x10] sm:$0xff] %vm117, %v551
    %560 = vst.msk [vmem:[#allocation11 + $0x18] sm:$0xff] %vm117, %v552
    %561 = vst.msk [vmem:[#allocation11 + $0x20] sm:$0xff] %vm117, %v553
    %562 = vst.msk [vmem:[#allocation11 + $0x28] sm:$0xff] %vm117, %v554
    %563 = vst.msk [vmem:[#allocation11 + $0x30] sm:$0xff] %vm117, %v555
    %564 = vst.msk [vmem:[#allocation11 + $0x38] sm:$0xff] %vm117, %v556
    %v565 = vmul.f32 %v530, %v415
    %v566 = vmul.f32 %v530, %v420
    %v567 = vmul.f32 %v530, %v425
    %v568 = vmul.f32 %v530, %v430
    %v569 = vmul.f32 %v530, %v512
    %v570 = vmul.f32 %v530, %v517
    %v571 = vmul.f32 %v530, %v522
    %v572 = vmul.f32 %v530, %v527
    %v573 = vmul.f32 %v540, %v101
    %v574 = vmul.f32 %v540, %v102
    %v575 = vmul.f32 %v540, %v103
    %v576 = vmul.f32 %v540, %v104
    %v577 = vmul.f32 %v540, %v105
    %v578 = vmul.f32 %v540, %v106
    %v579 = vmul.f32 %v540, %v107
    %v580 = vmul.f32 %v540, %v108
    %v581 = vadd.f32 %v565, %v573
    %v582 = vadd.f32 %v566, %v574
    %v583 = vadd.f32 %v567, %v575
    %v584 = vadd.f32 %v568, %v576
    %v585 = vadd.f32 %v569, %v577
    %v586 = vadd.f32 %v570, %v578
    %v587 = vadd.f32 %v571, %v579
    %v588 = vadd.f32 %v572, %v580
    %589 = vst.msk [vmem:[#allocation12] sm:$0xff] %vm117, %v581
    %590 = vst.msk [vmem:[#allocation12 + $0x8] sm:$0xff] %vm117, %v582
    %591 = vst.msk [vmem:[#allocation12 + $0x10] sm:$0xff] %vm117, %v583
    %592 = vst.msk [vmem:[#allocation12 + $0x18] sm:$0xff] %vm117, %v584
    %593 = vst.msk [vmem:[#allocation12 + $0x20] sm:$0xff] %vm117, %v585
    %594 = vst.msk [vmem:[#allocation12 + $0x28] sm:$0xff] %vm117, %v586
    %595 = vst.msk [vmem:[#allocation12 + $0x30] sm:$0xff] %vm117, %v587
    %596 = vst.msk [vmem:[#allocation12 + $0x38] sm:$0xff] %vm117, %v588
    // Predicated region
    $region38: #{tpu_custom_call.1} parent=1 // pred_check
      _
    $region39: #{tpu_custom_call.1} parent=1 // pred_check_branch
      %598 = sbr.rel (0) target = $region41
    $region40: #{tpu_custom_call.1} parent=1 // pred_region
      %s600 = ssub.s32 1024, 1024
      %601 = vsyncadd [#allocation5], %s600
      %s602 = sshll.u32 [#allocation11], 4
      %s603 = int_to_ptr.vmem [resolvable:$true] %s602
      %608 = dma.vmem_to_hbm [thread:$0]  %s603, 1024, %s5, [#allocation5], 128, 128, 8
    $region41: #{tpu_custom_call.1} parent=1 // pred_fallthru
      _
    // Predicated region
    $region42: #{tpu_custom_call.1} parent=1 // pred_check
      _
    $region43: #{tpu_custom_call.1} parent=1 // pred_check_branch
      %610 = sbr.rel (0) target = $region45
    $region44: #{tpu_custom_call.1} parent=1 // pred_region
      %s612 = ssub.s32 1024, 1024
      %613 = vsyncadd [#allocation13], %s612
      %s614 = sshll.u32 [#allocation12], 4
      %s615 = int_to_ptr.vmem [resolvable:$true] %s614
      %620 = dma.vmem_to_hbm [thread:$0]  %s615, 1024, %s6, [#allocation13], 128, 128, 8
    $region45: #{tpu_custom_call.1} parent=1 // pred_fallthru
      _
    // Predicated region
    $region46: #{tpu_custom_call.1} parent=1 // pred_check
      _
    $region47: #{tpu_custom_call.1} parent=1 // pred_check_branch
      %622 = sbr.rel (0) target = $region49
    $region48: #{tpu_custom_call.1} parent=1 // pred_region
      %623 = dma.done [#allocation5], 1024
    $region49: #{tpu_custom_call.1} parent=1 // pred_fallthru
      _
    // Predicated region
    $region50: #{tpu_custom_call.1} parent=1 // pred_check
      _
    $region51: #{tpu_custom_call.1} parent=1 // pred_check_branch
      %625 = sbr.rel (0) target = $region53
    $region52: #{tpu_custom_call.1} parent=1 // pred_region
      %626 = dma.done [#allocation13], 1024
    $region53: #{tpu_custom_call.1} parent=1 // pred_fallthru
      _
    %627 = vsyncpa [#allocation4], 1
    %628 = vsyncpa [#allocation7], 1
    %629 = vsyncpa [#allocation10], 1
    %630 = vsyncpa [#allocation5], 1
    %631 = vsyncpa [#allocation13], 1

</llo_original>
